<compile_context>
chip_gen: v6e
topology: v6e:2x2x1
jax: 0.10.0
libtpu: 0.0.40
codegen_flags: <defaults>
</compile_context>

<pallas_src>
import functools

import jax
import jax.numpy as jnp
from jax import lax
from jax.experimental import pallas as pl
from jax.experimental.pallas import tpu as pltpu


# ---------------------------------------------------------------------------
# Helpers
# ---------------------------------------------------------------------------

_WHOLE_K_X_BUDGET = 16 * 1024 * 1024   # double-buffered x row-panel cap (bytes)


def _round_up(x, m):
    return ((x + m - 1) // m) * m


def _sublane(dtype):
    # Minimum second-to-last dim multiple: 8 (f32), 16 (bf16), 32 (int8/fp8).
    return max(8, 32 // jnp.dtype(dtype).itemsize)


# ---------------------------------------------------------------------------
# Kernel
# ---------------------------------------------------------------------------

def _linear_kernel(*refs, tk, has_bias, whole_k_x, acc_in_out):
    # Ref order: x, w, [bias], out, [acc scratch]
    it = iter(refs)
    x_ref = next(it)
    w_ref = next(it)
    b_ref = next(it) if has_bias else None
    o_ref = next(it)
    acc_ref = o_ref if acc_in_out else next(it)

    k = pl.program_id(2)

    @pl.when(k == 0)
    def _():
        acc_ref[...] = jnp.zeros_like(acc_ref)

    if whole_k_x:
        # x_ref holds the whole K panel (tm, INp); slice this step's chunk.
        start = pl.multiple_of(k * tk, tk)
        x_tile = x_ref[:, pl.ds(start, tk)]
    else:
        x_tile = x_ref[...]

    # (tm, tk) x (tn, tk) -> (tm, tn): contract IN (lane dim of both tiles).
    acc_ref[...] += lax.dot_general(
        x_tile, w_ref[...],
        dimension_numbers=(((1,), (1,)), ((), ())),
        preferred_element_type=jnp.float32,
    )

    if has_bias or not acc_in_out:
        @pl.when(k == pl.num_programs(2) - 1)
        def _():
            if acc_in_out:
                # f32 output block is the accumulator; just add the bias once.
                o_ref[...] += b_ref[...]
            else:
                res = acc_ref[...]
                if has_bias:
                    res = res + b_ref[...]
                o_ref[...] = res.astype(o_ref.dtype)


# ---------------------------------------------------------------------------
# Wrappers
# ---------------------------------------------------------------------------

def _param_tiles(IN, OUT, tn_max, tk_max):
    """Tile sizes along OUT/IN (independent of batch)."""
    tk = min(tk_max, _round_up(IN, 128))
    tn_full = _round_up(OUT, 128)
    tn = min(tn_max, tn_full)
    # v7x megacore: keep >= 2 blocks along N when N would otherwise be a
    # single block (harmless on 1-TC v5e/v6e; ~free with a resident x panel).
    if tn == tn_full and tn_full >= 256:
        tn = _round_up(pl.cdiv(tn_full, 2), 128)
    INp = _round_up(IN, tk)
    OUTp = _round_up(OUT, tn)
    return tn, tk, INp, OUTp


def _batch_plan(B, INp, tn, tk, dtype, tm_max):
    """Per-call plan: tm, padded batch, x residency mode, VMEM limit."""
    sl = _sublane(dtype)
    itemsize = jnp.dtype(dtype).itemsize
    tm = min(tm_max, _round_up(B, sl))   # B <= tm_max -> weight streams once
    Bp = _round_up(B, tm)
    x_panel_bytes = 2 * tm * INp * itemsize          # double-buffered panel
    whole_k_x = x_panel_bytes <= _WHOLE_K_X_BUDGET
    x_bytes = x_panel_bytes if whole_k_x else 2 * tm * tk * itemsize
    vmem_need = (x_bytes
                 + 2 * tn * tk * itemsize             # weight tiles
                 + 2 * tm * tn * itemsize             # output tiles
                 + tm * tn * 4                        # f32 accumulator (worst)
                 + 2 * 8 * tn * 4)                    # bias tiles
    vmem_limit = int(max(32 << 20, min(2 * vmem_need, 64 << 20)))
    return tm, Bp, whole_k_x, vmem_limit


def _linear_call(xp, wp, b2d, B, OUT, tm, tn, tk, whole_k_x, vmem_limit):
    Bp, INp = xp.shape
    OUTp = wp.shape[0]
    grid = (Bp // tm, OUTp // tn, INp // tk)

    out_dtype = xp.dtype
    acc_in_out = (out_dtype == jnp.float32)     # accumulate straight into out
    has_bias = b2d is not None

    if whole_k_x:
        x_spec = pl.BlockSpec((tm, INp), lambda i, j, k: (i, 0))
    else:
        x_spec = pl.BlockSpec((tm, tk), lambda i, j, k: (i, k))
    w_spec = pl.BlockSpec((tn, tk), lambda i, j, k: (j, k))
    o_spec = pl.BlockSpec((tm, tn), lambda i, j, k: (i, j))

    in_specs = [x_spec, w_spec]
    operands = [xp, wp]
    if has_bias:
        in_specs.append(pl.BlockSpec((1, tn), lambda i, j, k: (0, j)))
        operands.append(b2d)

    scratch = [] if acc_in_out else [pltpu.VMEM((tm, tn), jnp.float32)]

    kernel = functools.partial(
        _linear_kernel, tk=tk, has_bias=has_bias,
        whole_k_x=whole_k_x, acc_in_out=acc_in_out)

    itemsize = jnp.dtype(out_dtype).itemsize
    cost = pl.CostEstimate(
        flops=2 * Bp * INp * OUTp,
        transcendentals=0,
        bytes_accessed=(wp.size * (Bp // tm)                       # weight streams per M block
                        + xp.size * (1 if whole_k_x else OUTp // tn)
                        + Bp * OUTp) * itemsize,
    )

    yp = pl.pallas_call(
        kernel,
        out_shape=jax.ShapeDtypeStruct((Bp, OUTp), out_dtype),
        grid_spec=pltpu.PrefetchScalarGridSpec(
            num_scalar_prefetch=0,
            grid=grid,
            in_specs=in_specs,
            out_specs=o_spec,
            scratch_shapes=scratch,
        ),
        compiler_params=pltpu.CompilerParams(
            dimension_semantics=("parallel", "parallel", "arbitrary"),
            vmem_limit_bytes=vmem_limit,
        ),
        cost_estimate=cost,
    )(*operands)

    if Bp != B or OUTp != OUT:
        yp = yp[:B, :OUT]
    return yp


def make_linear(weight, bias=None, *, tm_max=512, tn_max=512, tk_max=512):
    """One-time parameter prep (pads weight/bias to tile multiples at
    init/load time); returns forward(x) that only pads x per call."""
    OUT, IN = weight.shape
    tn, tk, INp, OUTp = _param_tiles(IN, OUT, tn_max, tk_max)

    wp = weight
    if OUTp != OUT or INp != IN:
        wp = jnp.pad(weight, ((0, OUTp - OUT), (0, INp - IN)))
    b2d = None
    if bias is not None:
        b2d = bias.reshape(1, OUT)
        if OUTp != OUT:
            b2d = jnp.pad(b2d, ((0, 0), (0, OUTp - OUT)))

    def forward(x):
        B, IN_x = x.shape
        assert IN_x == IN, "in_features mismatch"
        tm, Bp, whole_k_x, vmem_limit = _batch_plan(B, INp, tn, tk,
                                                    x.dtype, tm_max)
        xp = x
        if Bp != B or INp != IN:
            xp = jnp.pad(x, ((0, Bp - B), (0, INp - IN)))
        return _linear_call(xp, wp, b2d, B, OUT, tm, tn, tk,
                            whole_k_x, vmem_limit)

    return forward


def linear_forward(x, weight, bias=None, *, tm_max=512, tn_max=512,
                   tk_max=512):
    """One-off convenience wrapper (pads params per call).  Prefer
    make_linear() so the weight/bias padding happens once at init time."""
    return make_linear(weight, bias, tm_max=tm_max, tn_max=tn_max,
                       tk_max=tk_max)(x)


def init_linear_params(key, in_features, out_features, bias=True,
                       dtype=jnp.float32):
    """Kaiming-uniform init matching the PyTorch module:
       weight, bias ~ Uniform(-in_features**-0.5, in_features**-0.5)."""
    high = in_features ** (-0.5)
    low = -high
    kw, kb = jax.random.split(key)
    weight = jax.random.uniform(kw, (out_features, in_features),
                                dtype=dtype, minval=low, maxval=high)
    b = None
    if bias:
        b = jax.random.uniform(kb, (out_features,), dtype=dtype,
                               minval=low, maxval=high)
    return weight, b


# ---------------------------------------------------------------------------
# Demo / self-test
# ---------------------------------------------------------------------------

if __name__ == "__main__":
    key = jax.random.PRNGKey(0)
    k1, k2, k3, k4, k5, k6 = jax.random.split(key, 6)

    # Tolerances are loose-ish because XLA's reference f32 matmul on TPU may
    # itself use reduced-precision MXU passes.
    TOL = dict(atol=1e-2, rtol=1e-2)

    # Case 1: small single-tile problem with bias (params padded once at init).
    B, IN, OUT = 8, 32, 64
    x = jax.random.normal(k1, (B, IN), dtype=jnp.float32)
    w, b = init_linear_params(k2, IN, OUT, bias=True)
    fwd = make_linear(w, b)
    y = jax.block_until_ready(fwd(x))
    y_ref = x @ w.T + b
    assert y.shape == (B, OUT)
    assert jnp.allclose(y, y_ref, **TOL), "bias case mismatch"

    # Case 2: ragged multi-tile, no bias.  Small tile caps force a (2, 3, 3)
    # grid, exercising K accumulation, whole-K x slicing, and M/N/K padding.
    B2, IN2, OUT2 = 24, 384, 320
    x2 = jax.random.normal(k3, (B2, IN2), dtype=jnp.float32)
    w2, _ = init_linear_params(k4, IN2, OUT2, bias=False)
    y2 = jax.block_until_ready(
        linear_forward(x2, w2, None, tm_max=16, tn_max=128, tk_max=128))
    y2_ref = x2 @ w2.T
    assert y2.shape == (B2, OUT2)
    assert jnp.allclose(y2, y2_ref, **TOL), "nobias multi-tile mismatch"

    # Case 3: default (large-tile) config with bias; OUT=384 triggers the
    # "split N into >= 2 blocks" heuristic and the resident x K-panel.
    B3, IN3, OUT3 = 8, 512, 384
    x3 = jax.random.normal(k5, (B3, IN3), dtype=jnp.float32)
    w3, b3 = init_linear_params(k6, IN3, OUT3, bias=True)
    y3 = jax.block_until_ready(linear_forward(x3, w3, b3))
    y3_ref = x3 @ w3.T + b3
    assert y3.shape == (B3, OUT3)
    assert jnp.allclose(y3, y3_ref, **TOL), "default-config case mismatch"

    print("KERNEL_OK")
</pallas_src>

<mosaic_0001>
module attributes {stable_mosaic.version = 11 : i64} {
  func.func @_linear_kernel(%arg0: i32, %arg1: i32, %arg2: i32, %arg3: memref<8x128xf32, #tpu.memory_space<vmem>>, %arg4: memref<128x128xf32, #tpu.memory_space<vmem>>, %arg5: memref<1x128xf32, #tpu.memory_space<vmem>>, %arg6: memref<8x128xf32, #tpu.memory_space<vmem>>) attributes {dimension_semantics = [#tpu.dimension_semantics<parallel>, #tpu.dimension_semantics<parallel>, #tpu.dimension_semantics<arbitrary>], iteration_bounds = array<i64: 1, 1, 1>, scalar_prefetch = 0 : i64, scratch_operands = 0 : i64, tpu.core_type = #tpu.core_type<tc>, window_params = [{transform_indices = @transform_0, window_bounds = array<i64: 8, 128>}, {transform_indices = @transform_1, window_bounds = array<i64: 128, 128>}, {transform_indices = @transform_2, window_bounds = array<i64: 1, 128>}, {transform_indices = @transform_3, window_bounds = array<i64: 8, 128>}]} {
    %c0_i32 = arith.constant 0 : i32
    %0 = arith.cmpi eq, %arg2, %c0_i32 : i32
    %1 = arith.extui %0 : i1 to i32
    %c0_i32_0 = arith.constant 0 : i32
    %2 = arith.cmpi ne, %1, %c0_i32_0 : i32
    scf.if %2 {
      %cst_9 = arith.constant 0.000000e+00 : f32
      %15 = vector.broadcast %cst_9 : f32 to vector<8x128xf32>
      %c0_10 = arith.constant 0 : index
      %c0_11 = arith.constant 0 : index
      %16 = vector.load %arg6[%c0_10, %c0_11] : memref<8x128xf32, #tpu.memory_space<vmem>>, vector<8x128xf32>
      tpu.vector_store %arg6[%c0_10, %c0_11], %15 {strides = array<i32>} : memref<8x128xf32, #tpu.memory_space<vmem>>, vector<8x128xf32>,
    } else {
    }
    %c128_i32 = arith.constant 128 : i32
    %3 = arith.muli %arg2, %c128_i32 : i32
    %4 = tpu.assume_multiple %3, 128 : i32
    %c0 = arith.constant 0 : index
    %5 = arith.index_cast %4 : i32 to index
    %6 = vector.load %arg3[%c0, %5] : memref<8x128xf32, #tpu.memory_space<vmem>>, vector<8x128xf32>
    %c0_1 = arith.constant 0 : index
    %c0_2 = arith.constant 0 : index
    %7 = vector.load %arg6[%c0_1, %c0_2] : memref<8x128xf32, #tpu.memory_space<vmem>>, vector<8x128xf32>
    %c0_3 = arith.constant 0 : index
    %c0_4 = arith.constant 0 : index
    %8 = vector.load %arg4[%c0_3, %c0_4] : memref<128x128xf32, #tpu.memory_space<vmem>>, vector<128x128xf32>
    %cst = arith.constant dense<0.000000e+00> : vector<8x128xf32>
    %9 = tpu.matmul %6, %8, %cst {dimension_numbers = #tpu.dot_dimension_numbers<[1], [1], [0], [0], [0, 0, 1, 0], [], []>} : vector<8x128xf32>, vector<128x128xf32>, vector<8x128xf32> -> vector<8x128xf32>
    %10 = arith.addf %7, %9 : vector<8x128xf32>
    %c0_5 = arith.constant 0 : index
    %c0_6 = arith.constant 0 : index
    %11 = vector.load %arg6[%c0_5, %c0_6] : memref<8x128xf32, #tpu.memory_space<vmem>>, vector<8x128xf32>
    tpu.vector_store %arg6[%c0_5, %c0_6], %10 {strides = array<i32>} : memref<8x128xf32, #tpu.memory_space<vmem>>, vector<8x128xf32>,
    %c0_i32_7 = arith.constant 0 : i32
    %12 = arith.cmpi eq, %arg2, %c0_i32_7 : i32
    %13 = arith.extui %12 : i1 to i32
    %c0_i32_8 = arith.constant 0 : i32
    %14 = arith.cmpi ne, %13, %c0_i32_8 : i32
    scf.if %14 {
      %c0_9 = arith.constant 0 : index
      %c0_10 = arith.constant 0 : index
      %15 = vector.load %arg6[%c0_9, %c0_10] : memref<8x128xf32, #tpu.memory_space<vmem>>, vector<8x128xf32>
      %c0_11 = arith.constant 0 : index
      %c0_12 = arith.constant 0 : index
      %16 = vector.load %arg5[%c0_11, %c0_12] : memref<1x128xf32, #tpu.memory_space<vmem>>, vector<1x128xf32>
      %17 = vector.broadcast %16 : vector<1x128xf32> to vector<8x128xf32>
      %18 = arith.addf %15, %17 : vector<8x128xf32>
      %c0_13 = arith.constant 0 : index
      %c0_14 = arith.constant 0 : index
      %19 = vector.load %arg6[%c0_13, %c0_14] : memref<8x128xf32, #tpu.memory_space<vmem>>, vector<8x128xf32>
      tpu.vector_store %arg6[%c0_13, %c0_14], %18 {strides = array<i32>} : memref<8x128xf32, #tpu.memory_space<vmem>>, vector<8x128xf32>,
    } else {
    }
    return
  }
  func.func @transform_0(%arg0: i32, %arg1: i32, %arg2: i32) -> (i32, i32) {
    %c0_i32 = arith.constant 0 : i32
    %c0_i32_0 = arith.constant 0 : i32
    return %arg0, %c0_i32 : i32, i32
  }
  func.func @transform_1(%arg0: i32, %arg1: i32, %arg2: i32) -> (i32, i32) {
    %c0_i32 = arith.constant 0 : i32
    return %arg1, %arg2 : i32, i32
  }
  func.func @transform_2(%arg0: i32, %arg1: i32, %arg2: i32) -> (i32, i32) {
    %c0_i32 = arith.constant 0 : i32
    %c0_i32_0 = arith.constant 0 : i32
    return %c0_i32, %arg1 : i32, i32
  }
  func.func @transform_3(%arg0: i32, %arg1: i32, %arg2: i32) -> (i32, i32) {
    %c0_i32 = arith.constant 0 : i32
    return %arg0, %arg1 : i32, i32
  }
}

</mosaic_0001>

<llo_original>
// kernel: tpu_custom_call.1
$region0: #{tpu_custom_call.1}
  #allocation0 [shape = 'u32[]', space=smem, size = 0x4, offset = 0x4, fixed_abs, tag = 'smem constant byte address 0x4 - core index']
  #allocation1 [shape = 'u32[144,128]{1,0:T(1,128)}', space=vmem, size = 0x12000, scoped, tag = 'internal scratch']
  %s0 = inlined_call_operand.hbm [shape: f32[8,128], index: 0, kind: input, shape index: {}]
  %s1 = inlined_call_operand.hbm [shape: f32[128,128], index: 1, kind: input, shape index: {}]
  %s2 = inlined_call_operand.vmem [shape: f32[1,128], index: 2, kind: input, shape index: {}]
  %s3 = inlined_call_operand.hbm [shape: f32[8,128], index: 3, kind: output, shape index: {}]
  %s4 = sld [smem:[#allocation0]]
  $region38: #{tpu_custom_call.1} parent=0
    _
  %s6 = ssub.s32 1, %s4
  %s7 = scalar_select 0, %s6, %s4
  $region1: #{tpu_custom_call.1} parent=0
    #allocation2 [shape = 'u8[4096]{0}', space=vmem, size = 0x1000, scoped, tag = 'input window, operand 0, single buffered']
    #allocation3 [shape = 's32[1]{0}', space=sflag, size = 0x4, scoped, tag = 'scoped memory for tpu_custom_call.1']
    #allocation4 [shape = 's32[1]{0}', space=sflag, size = 0x4, scoped, tag = 'scoped memory for tpu_custom_call.1']
    #allocation5 [shape = 'u8[65536]{0}', space=vmem, size = 0x10000, scoped, tag = 'input window, operand 1, single buffered']
    #allocation6 [shape = 's32[1]{0}', space=sflag, size = 0x4, scoped, tag = 'scoped memory for tpu_custom_call.1']
    #allocation7 [shape = 'u8[4096]{0}', space=vmem, size = 0x1000, scoped, tag = 'output window, operand 0, single buffered']
    %8 = vsyncpa [#allocation3], 0
    %9 = vsyncpa [#allocation6], 0
    %10 = vsyncpa [#allocation4], 0
    // Predicated region
    $region2: #{tpu_custom_call.1} parent=1 // pred_check
      _
    $region3: #{tpu_custom_call.1} parent=1 // pred_check_branch
      %12 = sbr.rel (0) target = $region5
    $region4: #{tpu_custom_call.1} parent=1 // pred_region
      %s14 = ssub.s32 128, 128
      %15 = vsyncadd [#allocation3], %s14
      %s17 = sshll.u32 [#allocation2], 4
      %s18 = int_to_ptr.vmem [resolvable:$true] %s17
      %20 = dma.hbm_to_vmem [thread:$0]  %s0, 128, %s18, [#allocation3]
    $region5: #{tpu_custom_call.1} parent=1 // pred_fallthru
      _
    // Predicated region
    $region6: #{tpu_custom_call.1} parent=1 // pred_check
      _
    $region7: #{tpu_custom_call.1} parent=1 // pred_check_branch
      %22 = sbr.rel (0) target = $region9
    $region8: #{tpu_custom_call.1} parent=1 // pred_region
      %s24 = ssub.s32 2048, 2048
      %25 = vsyncadd [#allocation6], %s24
      %s26 = sshll.u32 [#allocation5], 4
      %s27 = int_to_ptr.vmem [resolvable:$true] %s26
      %32 = dma.hbm_to_vmem [thread:$0]  %s1, 2048, %s27, [#allocation6], 128, 128, 8
    $region9: #{tpu_custom_call.1} parent=1 // pred_fallthru
      _
    // Predicated region
    $region10: #{tpu_custom_call.1} parent=1 // pred_check
      _
    $region11: #{tpu_custom_call.1} parent=1 // pred_check_branch
      %34 = sbr.rel (0) target = $region13
    $region12: #{tpu_custom_call.1} parent=1 // pred_region
      _
    $region13: #{tpu_custom_call.1} parent=1 // pred_fallthru
      _
    // Predicated region
    $region14: #{tpu_custom_call.1} parent=1 // pred_check
      _
    $region15: #{tpu_custom_call.1} parent=1 // pred_check_branch
      %36 = sbr.rel (0) target = $region17
    $region16: #{tpu_custom_call.1} parent=1 // pred_region
      %37 = dma.done [#allocation3], 128
    $region17: #{tpu_custom_call.1} parent=1 // pred_fallthru
      _
    // Predicated region
    $region18: #{tpu_custom_call.1} parent=1 // pred_check
      _
    $region19: #{tpu_custom_call.1} parent=1 // pred_check_branch
      %39 = sbr.rel (0) target = $region21
    $region20: #{tpu_custom_call.1} parent=1 // pred_region
      %40 = dma.done [#allocation6], 2048
    $region21: #{tpu_custom_call.1} parent=1 // pred_fallthru
      _
    %p41 = scmp.eq.s32.totalorder 0, 0
    // Predicated region
    $region22: #{tpu_custom_call.1} parent=1 // pred_check
      %p42 = pneg %p41
    $region23: #{tpu_custom_call.1} parent=1 // pred_check_branch
      %44 = sbr.rel (%p42) target = $region25
    $region24: #{tpu_custom_call.1} parent=1 // pred_region
      %45 = vst [vmem:[#allocation7] sm:$0xff] 0.0
    $region25: #{tpu_custom_call.1} parent=1 // pred_fallthru
      _
    %s46 = smul.u32 0, 128
    %s47 = sshra.s32 %s46, 7
    %s48 = sand.u32 %s46, 127
    %s49 = scalar_lea.vmem [#allocation2], %s47
    %v50 = vld [vmem:[%s49] sm:$0xff]
    %v51 = vld [vmem:[#allocation7] sm:$0xff]
    %v52 = vld [vmem:[#allocation5] sm:$0xff]
    %v53 = vld [vmem:[#allocation5 + $0x8] sm:$0xff]
    %v54 = vld [vmem:[#allocation5 + $0x10] sm:$0xff]
    %v55 = vld [vmem:[#allocation5 + $0x18] sm:$0xff]
    %v56 = vld [vmem:[#allocation5 + $0x20] sm:$0xff]
    %v57 = vld [vmem:[#allocation5 + $0x28] sm:$0xff]
    %v58 = vld [vmem:[#allocation5 + $0x30] sm:$0xff]
    %v59 = vld [vmem:[#allocation5 + $0x38] sm:$0xff]
    %v60 = vld [vmem:[#allocation5 + $0x40] sm:$0xff]
    %v61 = vld [vmem:[#allocation5 + $0x48] sm:$0xff]
    %v62 = vld [vmem:[#allocation5 + $0x50] sm:$0xff]
    %v63 = vld [vmem:[#allocation5 + $0x58] sm:$0xff]
    %v64 = vld [vmem:[#allocation5 + $0x60] sm:$0xff]
    %v65 = vld [vmem:[#allocation5 + $0x68] sm:$0xff]
    %v66 = vld [vmem:[#allocation5 + $0x70] sm:$0xff]
    %v67 = vld [vmem:[#allocation5 + $0x78] sm:$0xff]
    %68 = vmatprep.subr.mxu0 0.0
    %69 = vmatpush1.xpose.msra.mxu0 %v67
    %70 = vmatprep.subr.mxu0 0.0
    %71 = vmatpush1.xpose.msra.mxu0 %v66
    %72 = vmatprep.subr.mxu0 0.0
    %73 = vmatpush1.xpose.msra.mxu0 %v65
    %74 = vmatprep.subr.mxu0 0.0
    %75 = vmatpush1.xpose.msra.mxu0 %v64
    %76 = vmatprep.subr.mxu0 0.0
    %77 = vmatpush1.xpose.msra.mxu0 %v63
    %78 = vmatprep.subr.mxu0 0.0
    %79 = vmatpush1.xpose.msra.mxu0 %v62
    %80 = vmatprep.subr.mxu0 0.0
    %81 = vmatpush1.xpose.msra.mxu0 %v61
    %82 = vmatprep.subr.mxu0 0.0
    %83 = vmatpush1.xpose.msra.mxu0 %v60
    %84 = vmatprep.subr.mxu0 0.0
    %85 = vmatpush1.xpose.msra.mxu0 %v59
    %86 = vmatprep.subr.mxu0 0.0
    %87 = vmatpush1.xpose.msra.mxu0 %v58
    %88 = vmatprep.subr.mxu0 0.0
    %89 = vmatpush1.xpose.msra.mxu0 %v57
    %90 = vmatprep.subr.mxu0 0.0
    %91 = vmatpush1.xpose.msra.mxu0 %v56
    %92 = vmatprep.subr.mxu0 0.0
    %93 = vmatpush1.xpose.msra.mxu0 %v55
    %94 = vmatprep.subr.mxu0 0.0
    %95 = vmatpush1.xpose.msra.mxu0 %v54
    %96 = vmatprep.subr.mxu0 0.0
    %97 = vmatpush1.xpose.msra.mxu0 %v53
    %98 = vmatprep.subr.mxu0 0.0
    %99 = vmatpush1.xpose.msra.mxu0 %v52
    %100 = vmatprep.subr.mxu0 0.0
    %101 = vmatpush2.xpose.msra.mxu0 0.0
    %102 = vmatprep.subr.mxu0 0.0
    %103 = vmatpush2.xpose.msra.mxu0 0.0
    %104 = vmatprep.subr.mxu0 0.0
    %105 = vmatpush2.xpose.msra.mxu0 0.0
    %106 = vmatprep.subr.mxu0 0.0
    %107 = vmatpush2.xpose.msra.mxu0 0.0
    %108 = vmatprep.subr.mxu0 0.0
    %109 = vmatpush2.xpose.msra.mxu0 0.0
    %110 = vmatprep.subr.mxu0 0.0
    %111 = vmatpush2.xpose.msra.mxu0 0.0
    %112 = vmatprep.subr.mxu0 0.0
    %113 = vmatpush2.xpose.msra.mxu0 0.0
    %114 = vmatprep.subr.mxu0 0.0
    %115 = vmatpush2.xpose.msra.mxu0 0.0
    %116 = vmatprep.subr.mxu0 0.0
    %117 = vmatpush2.xpose.msra.mxu0 0.0
    %118 = vmatprep.subr.mxu0 0.0
    %119 = vmatpush2.xpose.msra.mxu0 0.0
    %120 = vmatprep.subr.mxu0 0.0
    %121 = vmatpush2.xpose.msra.mxu0 0.0
    %122 = vmatprep.subr.mxu0 0.0
    %123 = vmatpush2.xpose.msra.mxu0 0.0
    %124 = vmatprep.subr.mxu0 0.0
    %125 = vmatpush2.xpose.msra.mxu0 0.0
    %126 = vmatprep.subr.mxu0 0.0
    %127 = vmatpush2.xpose.msra.mxu0 0.0
    %128 = vmatprep.subr.mxu0 0.0
    %129 = vmatpush2.xpose.msra.mxu0 0.0
    %130 = vmatprep.subr.mxu0 0.0
    %131 = vmatpush2.xpose.msra.mxu0 0.0
    %132 = vmatprep.mubr.f32.mxu0 0.0
    %133 = vmatmul.mubr.f32.gmra.mxu0 %v50
    %v134 = vpop.f32.mrf.mxu0
    %v135 = vadd.f32 0.0, %v134
    %v136 = vpop.f32.mrf.mxu0
    %137 = vdwg.mxu0
    %v138 = vadd.f32 %v51, %v135
    %139 = vst [vmem:[#allocation7] sm:$0xff] %v138
    // Predicated region
    $region26: #{tpu_custom_call.1} parent=1 // pred_check
      %p140 = pneg %p41
    $region27: #{tpu_custom_call.1} parent=1 // pred_check_branch
      %142 = sbr.rel (%p140) target = $region29
    $region28: #{tpu_custom_call.1} parent=1 // pred_region
      %v143 = vld [vmem:[#allocation7] sm:$0xff]
      %v144 = vld [vmem:[%s2] sm:$0x1]
      %v146 = vlaneseq
      %v147 = vshrl.u32 %v146, 7
      %v148 = vsub.s32 0, %v147
      %v149 = vrot.slane %v144, %v148
      %v151 = vadd.f32 %v143, %v149
      %152 = vst [vmem:[#allocation7] sm:$0xff] %v151
    $region29: #{tpu_custom_call.1} parent=1 // pred_fallthru
      _
    // Predicated region
    $region30: #{tpu_custom_call.1} parent=1 // pred_check
      _
    $region31: #{tpu_custom_call.1} parent=1 // pred_check_branch
      %154 = sbr.rel (0) target = $region33
    $region32: #{tpu_custom_call.1} parent=1 // pred_region
      %s156 = ssub.s32 128, 128
      %157 = vsyncadd [#allocation4], %s156
      %s159 = sshll.u32 [#allocation7], 4
      %s160 = int_to_ptr.vmem [resolvable:$true] %s159
      %162 = dma.vmem_to_hbm [thread:$0]  %s160, 128, %s3, [#allocation4]
    $region33: #{tpu_custom_call.1} parent=1 // pred_fallthru
      _
    // Predicated region
    $region34: #{tpu_custom_call.1} parent=1 // pred_check
      _
    $region35: #{tpu_custom_call.1} parent=1 // pred_check_branch
      %164 = sbr.rel (0) target = $region37
    $region36: #{tpu_custom_call.1} parent=1 // pred_region
      %165 = dma.done [#allocation4], 128
    $region37: #{tpu_custom_call.1} parent=1 // pred_fallthru
      _
    %166 = vsyncpa [#allocation3], 1
    %167 = vsyncpa [#allocation6], 1
    %168 = vsyncpa [#allocation4], 1

</llo_original>
